<compile_context>
chip_gen: v6e
topology: v6e:2x2x1
jax: 0.10.0
libtpu: 0.0.40
codegen_flags: <defaults>
</compile_context>

<pallas_src>
import jax
import jax.numpy as jnp
from jax import lax
from jax.experimental import pallas as pl
from jax.experimental.pallas import tpu as pltpu


_BN_EPS = 1e-5
_LANE = 128


def _round_up(x, m):
    return ((x + m - 1) // m) * m


def _apply_activation(h, activation, coefficient):
    """Final activation (static choice; matches the PyTorch branches)."""
    if activation == 'exp':
        return jnp.exp(h)
    if activation == 'sigm':
        return jax.nn.sigmoid(h)
    if activation == 'sigm_mul':
        return coefficient * jax.nn.sigmoid(h)
    if activation == 'sigm_sum':
        return coefficient + jax.nn.sigmoid(h)
    if activation == 'sigm_sum_mul':
        return coefficient + coefficient * jax.nn.sigmoid(h)
    if activation == 'relu':
        return coefficient * jnp.maximum(h, 0.0)
    return h  # 'lin'


def _vmem_limit_bytes():
    """Pick a scoped-VMEM limit per generation (v7x has only 64 MiB)."""
    try:
        cap = int(pltpu.get_tpu_info().vmem_capacity_bytes)
    except Exception:
        cap = 64 * 1024 * 1024  # conservative fallback (v7x physical VMEM)
    return min((cap * 3) // 4, 96 * 1024 * 1024)


# ----------------------------------------------------------------------------
# Kernels
# ----------------------------------------------------------------------------
def _make_simple_kernel(num_layers, batch_norm, activation, coefficient,
                        out_feats, transposed_out):
    """One batch tile per grid step; all weights VMEM-resident.

    batch_norm=True is only valid when the single tile covers the full batch
    (training-mode BatchNorm1d statistics need every row)."""

    def kernel(*refs):
        x_ref = refs[0]
        w_refs = refs[1:1 + num_layers]
        o_ref = refs[1 + num_layers]

        h = x_ref[...]                                    # native dtype
        for li in range(num_layers - 1):
            w = w_refs[li][...]
            # MXU matmul in the parameter dtype, f32 accumulation.
            h = jnp.dot(h.astype(w.dtype), w,
                        preferred_element_type=jnp.float32)
            if batch_norm:
                # BatchNorm1d(affine=False), training mode: biased batch
                # statistics over the (full) batch axis, eps=1e-5.
                mean = jnp.mean(h, axis=0, keepdims=True)
                var = jnp.mean((h - mean) ** 2, axis=0, keepdims=True)
                h = (h - mean) * lax.rsqrt(var + _BN_EPS)
            h = jnp.maximum(h, 0.0)                       # ReLU (f32, VPU)

        w = w_refs[-1][...]
        s = jnp.dot(h.astype(w.dtype), w, preferred_element_type=jnp.float32)
        if transposed_out:
            # (tb, 128k) -> (128k, tb) aligned transpose, then keep only the
            # real rows so the activation / store touch no padded columns.
            s = jnp.transpose(s)[:out_feats, :]
        else:
            s = s[:, :out_feats]
        s = _apply_activation(s, activation, coefficient)
        o_ref[...] = s.astype(o_ref.dtype)

    return kernel


def _make_two_pass_bn_kernel(num_layers, activation, coefficient, out_feats,
                             batch_size, block_b, transposed_out):
    """Batch-tiled BN head. Grid = (num_hidden + 1, num_batch_tiles).

    Pass p (< num_hidden): forward layers [0, p) with already-computed stats,
    apply layer p's matmul, accumulate its per-feature sum / sum-of-squares
    (edge-tile rows masked out). Final pass: full forward + activation + store.
    """
    num_hidden = num_layers - 1

    def kernel(*refs):
        x_ref = refs[0]
        w_refs = refs[1:1 + num_layers]
        o_ref = refs[1 + num_layers]
        stat_refs = refs[2 + num_layers:]
        sum_refs = stat_refs[0::2]
        sq_refs = stat_refs[1::2]

        p = pl.program_id(0)
        i = pl.program_id(1)

        @pl.when((p == 0) & (i == 0))
        def _init():
            for r in stat_refs:
                r[...] = jnp.zeros_like(r)

        inv_n = 1.0 / batch_size
        rows = i * block_b + lax.broadcasted_iota(jnp.int32, (block_b, 1), 0)
        valid = rows < batch_size

        def fwd_hidden(upto):
            """Layers [0, upto): matmul -> BN (full-batch stats) -> ReLU."""
            h = x_ref[...]
            for li in range(upto):
                w = w_refs[li][...]
                h = jnp.dot(h.astype(w.dtype), w,
                            preferred_element_type=jnp.float32)
                mean = sum_refs[li][...] * inv_n
                var = jnp.maximum(sq_refs[li][...] * inv_n - mean * mean, 0.0)
                h = (h - mean) * lax.rsqrt(var + _BN_EPS)
                h = jnp.maximum(h, 0.0)
            return h

        for pp in range(num_hidden):
            @pl.when(p == pp)
            def _accumulate(pp=pp):
                h = fwd_hidden(pp)
                w = w_refs[pp][...]
                h = jnp.dot(h.astype(w.dtype), w,
                            preferred_element_type=jnp.float32)
                hm = jnp.where(valid, h, 0.0)      # mask OOB edge-tile rows
                sum_refs[pp][...] += jnp.sum(hm, axis=0, keepdims=True)
                sq_refs[pp][...] += jnp.sum(hm * hm, axis=0, keepdims=True)

        @pl.when(p == num_hidden)
        def _finalize():
            h = fwd_hidden(num_hidden)
            w = w_refs[-1][...]
            s = jnp.dot(h.astype(w.dtype), w,
                        preferred_element_type=jnp.float32)
            if transposed_out:
                s = jnp.transpose(s)[:out_feats, :]
            else:
                s = s[:, :out_feats]
            s = _apply_activation(s, activation, coefficient)
            o_ref[...] = s.astype(o_ref.dtype)

    return kernel


# ----------------------------------------------------------------------------
# Parameter handling
# ----------------------------------------------------------------------------
def init_mlp_head_params(key, num_feats=(512, 1), dtype=jnp.float32):
    """PyTorch-style (out_feats, in_feats) weights, kaiming-normal-ish, no bias."""
    assert len(num_feats) >= 2
    weights = []
    in_feats = num_feats[0]
    for out_feats in num_feats[1:]:
        key, sub = jax.random.split(key)
        std = (2.0 / in_feats) ** 0.5
        w = (std * jax.random.normal(sub, (out_feats, in_feats),
                                     dtype=jnp.float32)).astype(dtype)
        weights.append(w)
        in_feats = out_feats
    return weights


def prepare_mlp_head_params(weights, param_dtype=None):
    """One-time glue (do at param-load time, NOT per forward call):
      * transpose (out, in) -> (in, out) so the kernel hot path is x @ W,
      * zero-pad hidden feature dims up to multiples of 128 (lane-dense
        intermediates, full-K MXU passes; BN/ReLU of all-zero padded features
        stays exactly zero, so results are unchanged),
      * zero-pad the final layer's output dim up to a multiple of 128 (the
        kernel slices back to the true out_feats before activation/store, so
        this costs no HBM traffic),
      * optionally cast to param_dtype (bfloat16 recommended for serving:
        full-rate MXU, f32 accumulation is requested in-kernel).
    Returns (prepared_weights, true_out_feats)."""
    ws = [jnp.transpose(w) for w in weights]              # (in, out)
    n = len(ws)
    out_feats = ws[-1].shape[1]
    for li in range(n - 1):                               # hidden dims -> x128
        hid = ws[li].shape[1]
        hp = _round_up(hid, _LANE)
        if hp != hid:
            ws[li] = jnp.pad(ws[li], ((0, 0), (0, hp - hid)))
            ws[li + 1] = jnp.pad(ws[li + 1], ((0, hp - hid), (0, 0)))
    out_pad = _round_up(out_feats, _LANE)                 # final out -> x128
    if out_pad != out_feats:
        ws[-1] = jnp.pad(ws[-1], ((0, 0), (0, out_pad - out_feats)))
    if param_dtype is not None:
        ws = [w.astype(param_dtype) for w in ws]
    return ws, out_feats


# ----------------------------------------------------------------------------
# Forward pass
# ----------------------------------------------------------------------------
def mlp_head_forward(x, prepared_weights, out_feats, *, batch_norm=True,
                     activation='lin', coefficient=64.0, block_b=1024):
    """Pallas forward pass of MLPHead.

    x:                 (B, num_feats[0])
    prepared_weights:  output of prepare_mlp_head_params()
    out_feats:         true final feature count (before lane padding)
    Returns {'scale': (B, num_feats[-1])} like the PyTorch module.

    BatchNorm uses training-mode (full-batch, biased) statistics, matching the
    PyTorch module in .train() mode."""
    # TODO(synk): eval-mode BatchNorm (running_mean/running_var inputs) so the
    # plain batch-tiled path can also serve inference-time BN heads directly.
    num_layers = len(prepared_weights)
    b, in_feats = x.shape
    assert in_feats == prepared_weights[0].shape[0], (in_feats,
                                                      prepared_weights[0].shape)
    coefficient = float(coefficient)

    # 'exp' can overflow low-precision outputs; keep that branch in f32.
    out_dtype = jnp.float32 if activation == 'exp' else x.dtype
    block_b = max(_LANE, _round_up(block_b, _LANE))
    needs_bn = batch_norm and num_layers > 1
    vmem_limit = _vmem_limit_bytes()

    # Weights: index maps constant in the grid -> blocks stay VMEM-resident
    # across batch tiles (no per-tile re-DMA).
    def _w_specs(ngrid):
        if ngrid == 1:
            return [pl.BlockSpec(w.shape, lambda i: (0, 0))
                    for w in prepared_weights]
        return [pl.BlockSpec(w.shape, lambda p, i: (0, 0))
                for w in prepared_weights]

    if b <= block_b:
        # Single full-batch block (exact full-batch BN stats in one tile).
        kernel = _make_simple_kernel(num_layers, needs_bn, activation,
                                     coefficient, out_feats,
                                     transposed_out=False)
        grid = (1,)
        in_specs = [pl.BlockSpec((b, in_feats), lambda i: (0, 0))] + _w_specs(1)
        out_shape = jax.ShapeDtypeStruct((b, out_feats), out_dtype)
        out_specs = pl.BlockSpec((b, out_feats), lambda i: (0, 0))
        scratch = []
        dim_sem = ("arbitrary",)
        transposed = False
    else:
        tb = block_b
        nbt = pl.cdiv(b, tb)
        # Tiny final dim -> transposed lane-dense output slab (out_feats, B).
        transposed = out_feats < _LANE
        if not needs_bn:
            kernel = _make_simple_kernel(num_layers, False, activation,
                                         coefficient, out_feats,
                                         transposed_out=transposed)
            grid = (nbt,)
            in_specs = ([pl.BlockSpec((tb, in_feats), lambda i: (i, 0))]
                        + _w_specs(1))
            if transposed:
                out_shape = jax.ShapeDtypeStruct((out_feats, b), out_dtype)
                out_specs = pl.BlockSpec((out_feats, tb), lambda i: (0, i))
            else:
                out_shape = jax.ShapeDtypeStruct((b, out_feats), out_dtype)
                out_specs = pl.BlockSpec((tb, out_feats), lambda i: (i, 0))
            scratch = []
            dim_sem = ("parallel",)
        else:
            # Two-pass batch-tiled BN (pipelined, bounded VMEM).
            num_hidden = num_layers - 1
            kernel = _make_two_pass_bn_kernel(num_layers, activation,
                                              coefficient, out_feats, b, tb,
                                              transposed_out=transposed)
            grid = (num_hidden + 1, nbt)
            in_specs = ([pl.BlockSpec((tb, in_feats), lambda p, i: (i, 0))]
                        + _w_specs(2))
            if transposed:
                out_shape = jax.ShapeDtypeStruct((out_feats, b), out_dtype)
                out_specs = pl.BlockSpec((out_feats, tb), lambda p, i: (0, i))
            else:
                out_shape = jax.ShapeDtypeStruct((b, out_feats), out_dtype)
                out_specs = pl.BlockSpec((tb, out_feats), lambda p, i: (i, 0))
            scratch = []
            for w in prepared_weights[:-1]:
                hp = w.shape[1]
                scratch += [pltpu.VMEM((1, hp), jnp.float32),   # sum
                            pltpu.VMEM((1, hp), jnp.float32)]   # sum of squares
            # Both axes sequential: the pass axis carries the statistics and
            # the batch axis accumulates into shared VMEM scratch.
            dim_sem = ("arbitrary", "arbitrary")

    out = pl.pallas_call(
        kernel,
        out_shape=out_shape,
        grid=grid,
        in_specs=in_specs,
        out_specs=out_specs,
        scratch_shapes=scratch,
        compiler_params=pltpu.CompilerParams(
            dimension_semantics=dim_sem,
            vmem_limit_bytes=vmem_limit),
    )(x, *prepared_weights)

    if transposed:
        out = jnp.transpose(out)           # (B, out_feats)
    return {'scale': out}


# ----------------------------------------------------------------------------
# Pure-JAX reference (weights in PyTorch (out, in) layout)
# ----------------------------------------------------------------------------
def mlp_head_reference(x, weights, *, batch_norm=True, activation='lin',
                       coefficient=64.0, param_dtype=None):
    h = x
    n = len(weights)
    for li, w in enumerate(weights):
        wd = w if param_dtype is None else w.astype(param_dtype)
        h = jnp.dot(h.astype(wd.dtype), wd.T,
                    preferred_element_type=jnp.float32)
        if li < n - 1:
            if batch_norm:
                mean = jnp.mean(h, axis=0, keepdims=True)
                var = jnp.mean((h - mean) ** 2, axis=0, keepdims=True)
                h = (h - mean) * lax.rsqrt(var + _BN_EPS)
            h = jnp.maximum(h, 0.0)
    h = _apply_activation(h, activation, float(coefficient))
    out_dtype = jnp.float32 if activation == 'exp' else x.dtype
    return h.astype(out_dtype)


if __name__ == "__main__":
    key = jax.random.PRNGKey(0)
    k1, k2, k3, kw = jax.random.split(key, 4)

    # Small shapes consistent with the module: num_feats=(128, 64, 1)
    # (Linear -> BatchNorm1d -> ReLU -> Linear).
    num_feats = (128, 64, 1)
    weights = init_mlp_head_params(kw, num_feats)
    ws_f32, out_feats = prepare_mlp_head_params(weights)

    # ---- 1) batch_norm=True, small batch -> single full-batch block, f32. ----
    B1 = 16
    x1 = jax.random.normal(k1, (B1, num_feats[0]), dtype=jnp.float32)
    out1 = jax.block_until_ready(
        mlp_head_forward(x1, ws_f32, out_feats, batch_norm=True,
                         activation='lin')['scale'])
    ref1 = mlp_head_reference(x1, weights, batch_norm=True, activation='lin')
    assert out1.shape == (B1, num_feats[-1]), out1.shape
    assert jnp.allclose(out1, ref1, atol=1e-4, rtol=1e-4), \
        float(jnp.max(jnp.abs(out1 - ref1)))

    # ---- 2) batch_norm=False -> batch-tiled grid, transposed lane-dense out. -
    B2, TB = 256, 128
    x2 = jax.random.normal(k2, (B2, num_feats[0]), dtype=jnp.float32)
    out2 = jax.block_until_ready(
        mlp_head_forward(x2, ws_f32, out_feats, batch_norm=False,
                         activation='sigm_mul', coefficient=64.0,
                         block_b=TB)['scale'])
    ref2 = mlp_head_reference(x2, weights, batch_norm=False,
                              activation='sigm_mul', coefficient=64.0)
    assert out2.shape == (B2, num_feats[-1]), out2.shape
    assert jnp.allclose(out2, ref2, atol=1e-4, rtol=1e-4), \
        float(jnp.max(jnp.abs(out2 - ref2)))

    # ---- 3) batch_norm=True, B > block_b (and not a multiple of it) ->
    #         two-pass batch-tiled BN with edge-row masking; 'exp' head. -------
    B3 = 320
    x3 = jax.random.normal(k3, (B3, num_feats[0]), dtype=jnp.float32)
    out3 = jax.block_until_ready(
        mlp_head_forward(x3, ws_f32, out_feats, batch_norm=True,
                         activation='exp', block_b=TB)['scale'])
    ref3 = mlp_head_reference(x3, weights, batch_norm=True, activation='exp')
    assert out3.shape == (B3, num_feats[-1]), out3.shape
    assert jnp.allclose(out3, ref3, atol=1e-3, rtol=1e-3), \
        float(jnp.max(jnp.abs(out3 - ref3)))

    # ---- 4) bf16 params + bf16 activations (recommended serving config). -----
    ws_bf16, _ = prepare_mlp_head_params(weights, param_dtype=jnp.bfloat16)
    x4 = x1.astype(jnp.bfloat16)
    out4 = jax.block_until_ready(
        mlp_head_forward(x4, ws_bf16, out_feats, batch_norm=True,
                         activation='lin')['scale'])
    ref4 = mlp_head_reference(x4, weights, batch_norm=True, activation='lin',
                              param_dtype=jnp.bfloat16)
    assert out4.shape == (B1, num_feats[-1]), out4.shape
    assert jnp.allclose(out4.astype(jnp.float32), ref4.astype(jnp.float32),
                        atol=3e-2, rtol=3e-2), \
        float(jnp.max(jnp.abs(out4.astype(jnp.float32)
                              - ref4.astype(jnp.float32))))

    print("KERNEL_OK")
</pallas_src>

<mosaic_0001>
module attributes {stable_mosaic.version = 11 : i64} {
  func.func @kernel(%arg0: i32, %arg1: memref<16x128xf32, #tpu.memory_space<vmem>>, %arg2: memref<128x128xf32, #tpu.memory_space<vmem>>, %arg3: memref<128x128xf32, #tpu.memory_space<vmem>>, %arg4: memref<16x1xf32, #tpu.memory_space<vmem>>) attributes {dimension_semantics = [#tpu.dimension_semantics<arbitrary>], iteration_bounds = array<i64: 1>, scalar_prefetch = 0 : i64, scratch_operands = 0 : i64, tpu.core_type = #tpu.core_type<tc>, window_params = [{pipeline_mode = #tpu.pipeline_mode<synchronous>, transform_indices = @transform_0, window_bounds = array<i64: 16, 128>}, {pipeline_mode = #tpu.pipeline_mode<synchronous>, transform_indices = @transform_1, window_bounds = array<i64: 128, 128>}, {pipeline_mode = #tpu.pipeline_mode<synchronous>, transform_indices = @transform_2, window_bounds = array<i64: 128, 128>}, {pipeline_mode = #tpu.pipeline_mode<synchronous>, transform_indices = @transform_3, window_bounds = array<i64: 16, 1>}]} {
    %c0 = arith.constant 0 : index
    %c0_0 = arith.constant 0 : index
    %0 = vector.load %arg1[%c0, %c0_0] : memref<16x128xf32, #tpu.memory_space<vmem>>, vector<16x128xf32>
    %c0_1 = arith.constant 0 : index
    %c0_2 = arith.constant 0 : index
    %1 = vector.load %arg2[%c0_1, %c0_2] : memref<128x128xf32, #tpu.memory_space<vmem>>, vector<128x128xf32>
    %cst = arith.constant dense<0.000000e+00> : vector<16x128xf32>
    %2 = tpu.matmul %0, %1, %cst {dimension_numbers = #tpu.dot_dimension_numbers<[1], [0], [0], [1], [0, 0, 1, 1], [], []>} : vector<16x128xf32>, vector<128x128xf32>, vector<16x128xf32> -> vector<16x128xf32>
    %cst_3 = arith.constant dense<0.000000e+00> : vector<128xf32>
    %3 = vector.multi_reduction <add>, %2, %cst_3 [0] : vector<16x128xf32> to vector<128xf32>
    %4 = vector.shape_cast %3 : vector<128xf32> to vector<1x128xf32>
    %cst_4 = arith.constant 1.600000e+01 : f32
    %5 = vector.broadcast %cst_4 : f32 to vector<1x128xf32>
    %6 = arith.divf %4, %5 : vector<1x128xf32>
    %7 = vector.broadcast %6 : vector<1x128xf32> to vector<16x128xf32>
    %8 = arith.subf %2, %7 : vector<16x128xf32>
    %9 = arith.mulf %8, %8 : vector<16x128xf32>
    %cst_5 = arith.constant dense<0.000000e+00> : vector<128xf32>
    %10 = vector.multi_reduction <add>, %9, %cst_5 [0] : vector<16x128xf32> to vector<128xf32>
    %11 = vector.shape_cast %10 : vector<128xf32> to vector<1x128xf32>
    %cst_6 = arith.constant 1.600000e+01 : f32
    %12 = vector.broadcast %cst_6 : f32 to vector<1x128xf32>
    %13 = arith.divf %11, %12 : vector<1x128xf32>
    %14 = vector.broadcast %6 : vector<1x128xf32> to vector<16x128xf32>
    %15 = arith.subf %2, %14 : vector<16x128xf32>
    %cst_7 = arith.constant 9.99999974E-6 : f32
    %16 = vector.broadcast %cst_7 : f32 to vector<1x128xf32>
    %17 = arith.addf %13, %16 : vector<1x128xf32>
    %18 = math.rsqrt %17 : vector<1x128xf32>
    %19 = vector.broadcast %18 : vector<1x128xf32> to vector<16x128xf32>
    %20 = arith.mulf %15, %19 : vector<16x128xf32>
    %cst_8 = arith.constant 0.000000e+00 : f32
    %21 = vector.broadcast %cst_8 : f32 to vector<16x128xf32>
    %22 = arith.maximumf %20, %21 : vector<16x128xf32>
    %c0_9 = arith.constant 0 : index
    %c0_10 = arith.constant 0 : index
    %23 = vector.load %arg3[%c0_9, %c0_10] : memref<128x128xf32, #tpu.memory_space<vmem>>, vector<128x128xf32>
    %cst_11 = arith.constant dense<0.000000e+00> : vector<16x128xf32>
    %24 = tpu.matmul %22, %23, %cst_11 {dimension_numbers = #tpu.dot_dimension_numbers<[1], [0], [0], [1], [0, 0, 1, 1], [], []>} : vector<16x128xf32>, vector<128x128xf32>, vector<16x128xf32> -> vector<16x128xf32>
    %25 = vector.extract_strided_slice %24 {offsets = [0, 0], sizes = [16, 1], strides = [1, 1]} : vector<16x128xf32> to vector<16x1xf32>
    %c0_12 = arith.constant 0 : index
    %c0_13 = arith.constant 0 : index
    %26 = vector.load %arg4[%c0_12, %c0_13] : memref<16x1xf32, #tpu.memory_space<vmem>>, vector<16x1xf32>
    tpu.vector_store %arg4[%c0_12, %c0_13], %25 {strides = array<i32>} : memref<16x1xf32, #tpu.memory_space<vmem>>, vector<16x1xf32>,
    return
  }
  func.func @transform_0(%arg0: i32) -> (i32, i32) {
    %c0_i32 = arith.constant 0 : i32
    %c0_i32_0 = arith.constant 0 : i32
    %c0_i32_1 = arith.constant 0 : i32
    return %c0_i32, %c0_i32_0 : i32, i32
  }
  func.func @transform_1(%arg0: i32) -> (i32, i32) {
    %c0_i32 = arith.constant 0 : i32
    %c0_i32_0 = arith.constant 0 : i32
    %c0_i32_1 = arith.constant 0 : i32
    return %c0_i32, %c0_i32_0 : i32, i32
  }
  func.func @transform_2(%arg0: i32) -> (i32, i32) {
    %c0_i32 = arith.constant 0 : i32
    %c0_i32_0 = arith.constant 0 : i32
    %c0_i32_1 = arith.constant 0 : i32
    return %c0_i32, %c0_i32_0 : i32, i32
  }
  func.func @transform_3(%arg0: i32) -> (i32, i32) {
    %c0_i32 = arith.constant 0 : i32
    %c0_i32_0 = arith.constant 0 : i32
    %c0_i32_1 = arith.constant 0 : i32
    return %c0_i32, %c0_i32_0 : i32, i32
  }
}

</mosaic_0001>

<llo_original>
// kernel: tpu_custom_call.1
$region0: #{tpu_custom_call.1}
  #allocation0 [shape = 'u32[]', space=smem, size = 0x4, offset = 0x4, fixed_abs, tag = 'smem constant byte address 0x4 - core index']
  #allocation1 [shape = 'u32[144,128]{1,0:T(1,128)}', space=vmem, size = 0x12000, scoped, tag = 'internal scratch']
  %s0 = inlined_call_operand.hbm [shape: f32[16,128], index: 0, kind: input, shape index: {}]
  %s1 = inlined_call_operand.hbm [shape: f32[128,128], index: 1, kind: input, shape index: {}]
  %s2 = inlined_call_operand.hbm [shape: f32[128,128], index: 2, kind: input, shape index: {}]
  %s3 = inlined_call_operand.vmem [shape: f32[16,1], index: 3, kind: output, shape index: {}]
  %s4 = sld [smem:[#allocation0]]
  $region34: #{tpu_custom_call.1} parent=0
    _
  %s6 = ssub.s32 1, %s4
  %s7 = scalar_select 0, %s6, %s4
  $region1: #{tpu_custom_call.1} parent=0
    #allocation2 [shape = 'u8[8192]{0}', space=vmem, size = 0x2000, scoped, tag = 'input window, operand 0, single buffered']
    #allocation3 [shape = 's32[1]{0}', space=sflag, size = 0x4, scoped, tag = 'scoped memory for tpu_custom_call.1']
    #allocation4 [shape = 'u8[65536]{0}', space=vmem, size = 0x10000, scoped, tag = 'input window, operand 1, single buffered']
    #allocation5 [shape = 's32[1]{0}', space=sflag, size = 0x4, scoped, tag = 'scoped memory for tpu_custom_call.1']
    #allocation6 [shape = 'u8[65536]{0}', space=vmem, size = 0x10000, scoped, tag = 'input window, operand 2, single buffered']
    %8 = vsyncpa [#allocation3], 0
    %9 = vsyncpa [#allocation5], 0
    // Predicated region
    $region2: #{tpu_custom_call.1} parent=1 // pred_check
      _
    $region3: #{tpu_custom_call.1} parent=1 // pred_check_branch
      %11 = sbr.rel (0) target = $region5
    $region4: #{tpu_custom_call.1} parent=1 // pred_region
      %s13 = ssub.s32 256, 256
      %14 = vsyncadd [#allocation3], %s13
      %s15 = sshll.u32 [#allocation2], 4
      %s16 = int_to_ptr.vmem [resolvable:$true] %s15
      %21 = dma.hbm_to_vmem [thread:$0]  %s0, 256, %s16, [#allocation3], 128, 128, 8
    $region5: #{tpu_custom_call.1} parent=1 // pred_fallthru
      _
    // Predicated region
    $region6: #{tpu_custom_call.1} parent=1 // pred_check
      _
    $region7: #{tpu_custom_call.1} parent=1 // pred_check_branch
      %23 = sbr.rel (0) target = $region9
    $region8: #{tpu_custom_call.1} parent=1 // pred_region
      %s25 = ssub.s32 2048, 2048
      %26 = vsyncadd [#allocation5], %s25
      %s27 = sshll.u32 [#allocation4], 4
      %s28 = int_to_ptr.vmem [resolvable:$true] %s27
      %33 = dma.hbm_to_vmem [thread:$0]  %s1, 2048, %s28, [#allocation5], 128, 128, 8
    $region9: #{tpu_custom_call.1} parent=1 // pred_fallthru
      _
    // Predicated region
    $region10: #{tpu_custom_call.1} parent=1 // pred_check
      _
    $region11: #{tpu_custom_call.1} parent=1 // pred_check_branch
      %35 = sbr.rel (0) target = $region13
    $region12: #{tpu_custom_call.1} parent=1 // pred_region
      %s37 = ssub.s32 2048, 2048
      %38 = vsyncadd [#allocation5], %s37
      %s39 = sshll.u32 [#allocation6], 4
      %s40 = int_to_ptr.vmem [resolvable:$true] %s39
      %45 = dma.hbm_to_vmem [thread:$0]  %s2, 2048, %s40, [#allocation5], 128, 128, 8
    $region13: #{tpu_custom_call.1} parent=1 // pred_fallthru
      _
    // Predicated region
    $region14: #{tpu_custom_call.1} parent=1 // pred_check
      _
    $region15: #{tpu_custom_call.1} parent=1 // pred_check_branch
      %47 = sbr.rel (0) target = $region17
    $region16: #{tpu_custom_call.1} parent=1 // pred_region
      %48 = dma.done [#allocation3], 256
    $region17: #{tpu_custom_call.1} parent=1 // pred_fallthru
      _
    // Predicated region
    $region18: #{tpu_custom_call.1} parent=1 // pred_check
      _
    $region19: #{tpu_custom_call.1} parent=1 // pred_check_branch
      %50 = sbr.rel (0) target = $region21
    $region20: #{tpu_custom_call.1} parent=1 // pred_region
      %51 = dma.done [#allocation5], 2048
    $region21: #{tpu_custom_call.1} parent=1 // pred_fallthru
      _
    // Predicated region
    $region22: #{tpu_custom_call.1} parent=1 // pred_check
      _
    $region23: #{tpu_custom_call.1} parent=1 // pred_check_branch
      %53 = sbr.rel (0) target = $region25
    $region24: #{tpu_custom_call.1} parent=1 // pred_region
      %54 = dma.done [#allocation5], 2048
    $region25: #{tpu_custom_call.1} parent=1 // pred_fallthru
      _
    %v55 = vld [vmem:[#allocation2] sm:$0xff]
    %v56 = vld [vmem:[#allocation2 + $0x8] sm:$0xff]
    %v57 = vld [vmem:[#allocation4] sm:$0xff]
    %v58 = vld [vmem:[#allocation4 + $0x8] sm:$0xff]
    %v59 = vld [vmem:[#allocation4 + $0x10] sm:$0xff]
    %v60 = vld [vmem:[#allocation4 + $0x18] sm:$0xff]
    %v61 = vld [vmem:[#allocation4 + $0x20] sm:$0xff]
    %v62 = vld [vmem:[#allocation4 + $0x28] sm:$0xff]
    %v63 = vld [vmem:[#allocation4 + $0x30] sm:$0xff]
    %v64 = vld [vmem:[#allocation4 + $0x38] sm:$0xff]
    %v65 = vld [vmem:[#allocation4 + $0x40] sm:$0xff]
    %v66 = vld [vmem:[#allocation4 + $0x48] sm:$0xff]
    %v67 = vld [vmem:[#allocation4 + $0x50] sm:$0xff]
    %v68 = vld [vmem:[#allocation4 + $0x58] sm:$0xff]
    %v69 = vld [vmem:[#allocation4 + $0x60] sm:$0xff]
    %v70 = vld [vmem:[#allocation4 + $0x68] sm:$0xff]
    %v71 = vld [vmem:[#allocation4 + $0x70] sm:$0xff]
    %v72 = vld [vmem:[#allocation4 + $0x78] sm:$0xff]
    %73 = vmatprep.subr.mxu0 0.0
    %74 = vmatpush1.msra.mxu0 %v72
    %75 = vmatprep.subr.mxu0 0.0
    %76 = vmatpush1.msra.mxu0 %v71
    %77 = vmatprep.subr.mxu0 0.0
    %78 = vmatpush1.msra.mxu0 %v70
    %79 = vmatprep.subr.mxu0 0.0
    %80 = vmatpush1.msra.mxu0 %v69
    %81 = vmatprep.subr.mxu0 0.0
    %82 = vmatpush1.msra.mxu0 %v68
    %83 = vmatprep.subr.mxu0 0.0
    %84 = vmatpush1.msra.mxu0 %v67
    %85 = vmatprep.subr.mxu0 0.0
    %86 = vmatpush1.msra.mxu0 %v66
    %87 = vmatprep.subr.mxu0 0.0
    %88 = vmatpush1.msra.mxu0 %v65
    %89 = vmatprep.subr.mxu0 0.0
    %90 = vmatpush1.msra.mxu0 %v64
    %91 = vmatprep.subr.mxu0 0.0
    %92 = vmatpush1.msra.mxu0 %v63
    %93 = vmatprep.subr.mxu0 0.0
    %94 = vmatpush1.msra.mxu0 %v62
    %95 = vmatprep.subr.mxu0 0.0
    %96 = vmatpush1.msra.mxu0 %v61
    %97 = vmatprep.subr.mxu0 0.0
    %98 = vmatpush1.msra.mxu0 %v60
    %99 = vmatprep.subr.mxu0 0.0
    %100 = vmatpush1.msra.mxu0 %v59
    %101 = vmatprep.subr.mxu0 0.0
    %102 = vmatpush1.msra.mxu0 %v58
    %103 = vmatprep.subr.mxu0 0.0
    %104 = vmatpush1.msra.mxu0 %v57
    %105 = vmatprep.subr.mxu0 0.0
    %106 = vmatpush2.msra.mxu0 0.0
    %107 = vmatprep.subr.mxu0 0.0
    %108 = vmatpush2.msra.mxu0 0.0
    %109 = vmatprep.subr.mxu0 0.0
    %110 = vmatpush2.msra.mxu0 0.0
    %111 = vmatprep.subr.mxu0 0.0
    %112 = vmatpush2.msra.mxu0 0.0
    %113 = vmatprep.subr.mxu0 0.0
    %114 = vmatpush2.msra.mxu0 0.0
    %115 = vmatprep.subr.mxu0 0.0
    %116 = vmatpush2.msra.mxu0 0.0
    %117 = vmatprep.subr.mxu0 0.0
    %118 = vmatpush2.msra.mxu0 0.0
    %119 = vmatprep.subr.mxu0 0.0
    %120 = vmatpush2.msra.mxu0 0.0
    %121 = vmatprep.subr.mxu0 0.0
    %122 = vmatpush2.msra.mxu0 0.0
    %123 = vmatprep.subr.mxu0 0.0
    %124 = vmatpush2.msra.mxu0 0.0
    %125 = vmatprep.subr.mxu0 0.0
    %126 = vmatpush2.msra.mxu0 0.0
    %127 = vmatprep.subr.mxu0 0.0
    %128 = vmatpush2.msra.mxu0 0.0
    %129 = vmatprep.subr.mxu0 0.0
    %130 = vmatpush2.msra.mxu0 0.0
    %131 = vmatprep.subr.mxu0 0.0
    %132 = vmatpush2.msra.mxu0 0.0
    %133 = vmatprep.subr.mxu0 0.0
    %134 = vmatpush2.msra.mxu0 0.0
    %135 = vmatprep.subr.mxu0 0.0
    %136 = vmatpush2.msra.mxu0 0.0
    %137 = vmatprep.mubr.f32.mxu0 0.0
    %138 = vmatmul.mubr.f32.gmra.mxu0 %v55
    %v139 = vpop.f32.mrf.mxu0
    %v140 = vadd.f32 0.0, %v139
    %v141 = vpop.f32.mrf.mxu0
    %142 = vmatprep.mubr.f32.mxu0 0.0
    %143 = vmatmul.mubr.f32.gmra.mxu0 %v56
    %v144 = vpop.f32.mrf.mxu0
    %v145 = vadd.f32 0.0, %v144
    %v146 = vpop.f32.mrf.mxu0
    %147 = vdwg.mxu0
    %v148 = vadd.f32 %v140, %v145
    %v149 = vrot.slane %v148, 4
    %v150 = vadd.f32 %v148, %v149
    %v151 = vrot.slane %v150, 2
    %v152 = vadd.f32 %v150, %v151
    %v153 = vrot.slane %v152, 1
    %v154 = vadd.f32 %v152, %v153
    %v155 = vrcp.pop 16.0
    %v156 = vmul.f32 %v154, %v155
    %v157 = vsub.f32 %v140, %v156
    %v158 = vsub.f32 %v145, %v156
    %v159 = vmul.f32 %v157, %v157
    %v160 = vmul.f32 %v158, %v158
    %v161 = vadd.f32 %v159, %v160
    %v162 = vrot.slane %v161, 4
    %v163 = vadd.f32 %v161, %v162
    %v164 = vrot.slane %v163, 2
    %v165 = vadd.f32 %v163, %v164
    %v166 = vrot.slane %v165, 1
    %v167 = vadd.f32 %v165, %v166
    %v168 = vmul.f32 %v167, %v155
    %v169 = vadd.f32 %v168, 1e-05
    %v170 = vrsqrt.pop %v169
    %v171 = vmul.f32 %v157, %v170
    %v172 = vmul.f32 %v158, %v170
    %v173 = vmax.f32 %v171, 0.0
    %v174 = vmax.f32 %v172, 0.0
    %v175 = vld [vmem:[#allocation6] sm:$0xff]
    %v176 = vld [vmem:[#allocation6 + $0x8] sm:$0xff]
    %v177 = vld [vmem:[#allocation6 + $0x10] sm:$0xff]
    %v178 = vld [vmem:[#allocation6 + $0x18] sm:$0xff]
    %v179 = vld [vmem:[#allocation6 + $0x20] sm:$0xff]
    %v180 = vld [vmem:[#allocation6 + $0x28] sm:$0xff]
    %v181 = vld [vmem:[#allocation6 + $0x30] sm:$0xff]
    %v182 = vld [vmem:[#allocation6 + $0x38] sm:$0xff]
    %v183 = vld [vmem:[#allocation6 + $0x40] sm:$0xff]
    %v184 = vld [vmem:[#allocation6 + $0x48] sm:$0xff]
    %v185 = vld [vmem:[#allocation6 + $0x50] sm:$0xff]
    %v186 = vld [vmem:[#allocation6 + $0x58] sm:$0xff]
    %v187 = vld [vmem:[#allocation6 + $0x60] sm:$0xff]
    %v188 = vld [vmem:[#allocation6 + $0x68] sm:$0xff]
    %v189 = vld [vmem:[#allocation6 + $0x70] sm:$0xff]
    %v190 = vld [vmem:[#allocation6 + $0x78] sm:$0xff]
    %191 = vmatprep.subr.mxu0 0.0
    %192 = vmatpush1.msra.mxu0 %v190
    %193 = vmatprep.subr.mxu0 0.0
    %194 = vmatpush1.msra.mxu0 %v189
    %195 = vmatprep.subr.mxu0 0.0
    %196 = vmatpush1.msra.mxu0 %v188
    %197 = vmatprep.subr.mxu0 0.0
    %198 = vmatpush1.msra.mxu0 %v187
    %199 = vmatprep.subr.mxu0 0.0
    %200 = vmatpush1.msra.mxu0 %v186
    %201 = vmatprep.subr.mxu0 0.0
    %202 = vmatpush1.msra.mxu0 %v185
    %203 = vmatprep.subr.mxu0 0.0
    %204 = vmatpush1.msra.mxu0 %v184
    %205 = vmatprep.subr.mxu0 0.0
    %206 = vmatpush1.msra.mxu0 %v183
    %207 = vmatprep.subr.mxu0 0.0
    %208 = vmatpush1.msra.mxu0 %v182
    %209 = vmatprep.subr.mxu0 0.0
    %210 = vmatpush1.msra.mxu0 %v181
    %211 = vmatprep.subr.mxu0 0.0
    %212 = vmatpush1.msra.mxu0 %v180
    %213 = vmatprep.subr.mxu0 0.0
    %214 = vmatpush1.msra.mxu0 %v179
    %215 = vmatprep.subr.mxu0 0.0
    %216 = vmatpush1.msra.mxu0 %v178
    %217 = vmatprep.subr.mxu0 0.0
    %218 = vmatpush1.msra.mxu0 %v177
    %219 = vmatprep.subr.mxu0 0.0
    %220 = vmatpush1.msra.mxu0 %v176
    %221 = vmatprep.subr.mxu0 0.0
    %222 = vmatpush1.msra.mxu0 %v175
    %223 = vmatprep.subr.mxu0 0.0
    %224 = vmatpush2.msra.mxu0 0.0
    %225 = vmatprep.subr.mxu0 0.0
    %226 = vmatpush2.msra.mxu0 0.0
    %227 = vmatprep.subr.mxu0 0.0
    %228 = vmatpush2.msra.mxu0 0.0
    %229 = vmatprep.subr.mxu0 0.0
    %230 = vmatpush2.msra.mxu0 0.0
    %231 = vmatprep.subr.mxu0 0.0
    %232 = vmatpush2.msra.mxu0 0.0
    %233 = vmatprep.subr.mxu0 0.0
    %234 = vmatpush2.msra.mxu0 0.0
    %235 = vmatprep.subr.mxu0 0.0
    %236 = vmatpush2.msra.mxu0 0.0
    %237 = vmatprep.subr.mxu0 0.0
    %238 = vmatpush2.msra.mxu0 0.0
    %239 = vmatprep.subr.mxu0 0.0
    %240 = vmatpush2.msra.mxu0 0.0
    %241 = vmatprep.subr.mxu0 0.0
    %242 = vmatpush2.msra.mxu0 0.0
    %243 = vmatprep.subr.mxu0 0.0
    %244 = vmatpush2.msra.mxu0 0.0
    %245 = vmatprep.subr.mxu0 0.0
    %246 = vmatpush2.msra.mxu0 0.0
    %247 = vmatprep.subr.mxu0 0.0
    %248 = vmatpush2.msra.mxu0 0.0
    %249 = vmatprep.subr.mxu0 0.0
    %250 = vmatpush2.msra.mxu0 0.0
    %251 = vmatprep.subr.mxu0 0.0
    %252 = vmatpush2.msra.mxu0 0.0
    %253 = vmatprep.subr.mxu0 0.0
    %254 = vmatpush2.msra.mxu0 0.0
    %255 = vmatprep.mubr.f32.mxu0 0.0
    %256 = vmatmul.mubr.f32.gmra.mxu0 %v173
    %v257 = vpop.f32.mrf.mxu0
    %v258 = vadd.f32 0.0, %v257
    %v259 = vpop.f32.mrf.mxu0
    %260 = vmatprep.mubr.f32.mxu0 0.0
    %261 = vmatmul.mubr.f32.gmra.mxu0 %v174
    %v262 = vpop.f32.mrf.mxu0
    %v263 = vadd.f32 0.0, %v262
    %v264 = vpop.f32.mrf.mxu0
    %265 = vdwg.mxu0
    %vm266 = vcmask 7168
    %267 = vst.msk [vmem:[%s3] sm:$0xff] %vm266, %v258
    %268 = vst.msk [vmem:[%s3 + $0x8] sm:$0xff] %vm266, %v263
    // Predicated region
    $region26: #{tpu_custom_call.1} parent=1 // pred_check
      _
    $region27: #{tpu_custom_call.1} parent=1 // pred_check_branch
      %270 = sbr.rel (0) target = $region29
    $region28: #{tpu_custom_call.1} parent=1 // pred_region
      _
    $region29: #{tpu_custom_call.1} parent=1 // pred_fallthru
      _
    // Predicated region
    $region30: #{tpu_custom_call.1} parent=1 // pred_check
      _
    $region31: #{tpu_custom_call.1} parent=1 // pred_check_branch
      %272 = sbr.rel (0) target = $region33
    $region32: #{tpu_custom_call.1} parent=1 // pred_region
      _
    $region33: #{tpu_custom_call.1} parent=1 // pred_fallthru
      _
    %273 = vsyncpa [#allocation3], 1
    %274 = vsyncpa [#allocation5], 1

</llo_original>
